<compile_context>
chip_gen: v7x
topology: tpu7x:2x2x1
jax: 0.10.0
libtpu: 0.0.40
codegen_flags: <defaults>
</compile_context>

<pallas_src>
import functools

import jax
import jax.numpy as jnp
from jax.experimental import pallas as pl
from jax.experimental.pallas import tpu as pltpu


def _round_up(x, m):
    return (x + m - 1) // m * m


def _gcn_fused_kernel(x_ref, adj_ref, w_ref, b_ref, o_ref, act_ref, *, mxu_dtype):
    """One grid step == one GCN layer.  act_ref (VMEM scratch) carries the
    activation across layers; output is written only on the last layer."""
    l = pl.program_id(0)

    @pl.when(l == 0)
    def _():
        act_ref[...] = x_ref[...].astype(jnp.float32)

    # h = adj @ act : [N, N] @ [N, Fp] -> [N, Fp]   (MXU, f32 accumulate)
    h = jnp.dot(
        adj_ref[...].astype(mxu_dtype),
        act_ref[...].astype(mxu_dtype),
        preferred_element_type=jnp.float32,
    )
    # y = h @ W[l] : [N, Fp] @ [Fp, Fp] -> [N, Fp]  (MXU, f32 accumulate)
    y = jnp.dot(
        h.astype(mxu_dtype),
        w_ref[...].astype(mxu_dtype),
        preferred_element_type=jnp.float32,
    )
    # bias add + ReLU in f32 on the VPU (lane-dense, Fp multiple of 128)
    y = y + b_ref[...]
    act_ref[...] = jnp.maximum(y, 0.0)

    @pl.when(l == pl.num_programs(0) - 1)
    def _():
        o_ref[...] = act_ref[...].astype(o_ref.dtype)


def gcn_forward(x, adj, weights, biases, *, mxu_dtype=jnp.float32):
    """Fused forward pass of the whole GCN stack.

    x:       [N, F]     node features
    adj:     [N, N]     (normalized) adjacency
    weights: [L, F, F]  stacked per-layer weights
    biases:  [L, 1, F]  stacked per-layer biases
    """
    n, f = x.shape
    num_layers = weights.shape[0]

    n_pad = _round_up(n, 8)        # sublane alignment
    f_pad = _round_up(f, 128)      # lane-dense feature axis

    dt = jnp.float32
    x_p = jnp.zeros((n_pad, f_pad), dt).at[:n, :f].set(x.astype(dt))
    adj_p = jnp.zeros((n_pad, n_pad), dt).at[:n, :n].set(adj.astype(dt))
    w_p = jnp.zeros((num_layers, f_pad, f_pad), dt).at[:, :f, :f].set(weights.astype(dt))
    b_p = jnp.zeros((num_layers, 1, f_pad), dt).at[:, :, :f].set(biases.astype(dt))

    # Advisory cost estimate for XLA scheduling around the custom call.
    flops = int(num_layers * (2 * n_pad * n_pad * f_pad + 2 * n_pad * f_pad * f_pad))
    bytes_accessed = int(
        4 * (n_pad * n_pad + 2 * n_pad * f_pad)                # adj + x + out
        + 4 * num_layers * (f_pad * f_pad + f_pad)             # all W, b
    )

    # VMEM budget: resident adj/x/out/act + double-buffered (W[l], b[l]).
    resident_bytes = 4 * (n_pad * n_pad + 3 * n_pad * f_pad)
    layer_bytes = 4 * 2 * (f_pad * f_pad + f_pad)
    vmem_limit = min(max(2 * (resident_bytes + layer_bytes), 4 << 20), 32 << 20)

    kernel = functools.partial(_gcn_fused_kernel, mxu_dtype=mxu_dtype)

    out_p = pl.pallas_call(
        kernel,
        out_shape=jax.ShapeDtypeStruct((n_pad, f_pad), x.dtype),
        grid_spec=pltpu.PrefetchScalarGridSpec(
            num_scalar_prefetch=0,
            grid=(num_layers,),
            in_specs=[
                pl.BlockSpec((n_pad, f_pad), lambda l: (0, 0)),        # x (loaded once)
                pl.BlockSpec((n_pad, n_pad), lambda l: (0, 0)),        # adj (loaded once)
                pl.BlockSpec((None, f_pad, f_pad), lambda l: (l, 0, 0)),  # W[l]
                pl.BlockSpec((None, 1, f_pad), lambda l: (l, 0, 0)),      # b[l]
            ],
            out_specs=pl.BlockSpec((n_pad, f_pad), lambda l: (0, 0)),
            scratch_shapes=[pltpu.VMEM((n_pad, f_pad), jnp.float32)],  # activation carry
        ),
        compiler_params=pltpu.CompilerParams(
            dimension_semantics=("arbitrary",),   # layers are sequentially dependent
            vmem_limit_bytes=int(vmem_limit),
        ),
        cost_estimate=pl.CostEstimate(
            flops=flops, transcendentals=0, bytes_accessed=bytes_accessed
        ),
    )(x_p, adj_p, w_p, b_p)

    return out_p[:n, :f]


def init_params(key, layer_num, feature_size, dtype=jnp.float32):
    """Deterministic stacked W[L,F,F] and b[L,1,F] (synthetic init)."""
    scale = 1.0 / float(feature_size) ** 0.5
    kw, kb = jax.random.split(key)
    w = (jax.random.uniform(kw, (layer_num, feature_size, feature_size), dtype) * 2.0 - 1.0) * scale
    b = (jax.random.uniform(kb, (layer_num, 1, feature_size), dtype) * 2.0 - 1.0) * scale
    return w, b


if __name__ == "__main__":
    layer_num = 3
    node_size = 16
    feature_size = 32

    key = jax.random.PRNGKey(0)
    kx, kadj, kp = jax.random.split(key, 3)

    # node features
    x = jax.random.normal(kx, (node_size, feature_size), jnp.float32)

    # symmetric adjacency with self loops, row-normalized (synthetic)
    a = (jax.random.uniform(kadj, (node_size, node_size)) > 0.7).astype(jnp.float32)
    adj = jnp.minimum(a + a.T + jnp.eye(node_size, dtype=jnp.float32), 1.0)
    adj = adj / jnp.sum(adj, axis=1, keepdims=True)

    weights, biases = init_params(kp, layer_num, feature_size)

    # Demo run in f32 (tight tolerance).  For v6e/v7x production, pass
    # mxu_dtype=jnp.bfloat16 to feed the MXU bf16 operands (f32 accumulate).
    out = gcn_forward(x, adj, weights, biases, mxu_dtype=jnp.float32)
    jax.block_until_ready(out)

    # pure-JAX reference of the same math
    ref = x
    for l in range(layer_num):
        ref = jnp.maximum(adj @ ref @ weights[l] + biases[l], 0.0)

    assert out.shape == (node_size, feature_size)
    assert jnp.allclose(out, ref, atol=1e-4, rtol=1e-4), float(jnp.max(jnp.abs(out - ref)))

    print("KERNEL_OK")
</pallas_src>

<mosaic_0001>
module attributes {stable_mosaic.version = 11 : i64} {
  func.func @_gcn_fused_kernel(%arg0: i32, %arg1: memref<16x128xf32, #tpu.memory_space<vmem>>, %arg2: memref<16x16xf32, #tpu.memory_space<vmem>>, %arg3: memref<1x128x128xf32, #tpu.memory_space<vmem>>, %arg4: memref<1x1x128xf32, #tpu.memory_space<vmem>>, %arg5: memref<16x128xf32, #tpu.memory_space<vmem>>, %arg6: memref<16x128xf32, #tpu.memory_space<vmem>>) attributes {dimension_semantics = [#tpu.dimension_semantics<arbitrary>], iteration_bounds = array<i64: 3>, scalar_prefetch = 0 : i64, scratch_operands = 1 : i64, tpu.core_type = #tpu.core_type<tc>, window_params = [{pipeline_mode = #tpu.pipeline_mode<synchronous>, transform_indices = @transform_0, window_bounds = array<i64: 16, 128>}, {pipeline_mode = #tpu.pipeline_mode<synchronous>, transform_indices = @transform_1, window_bounds = array<i64: 16, 16>}, {transform_indices = @transform_2, window_bounds = array<i64: 1, 128, 128>}, {transform_indices = @transform_3, window_bounds = array<i64: 1, 1, 128>}, {pipeline_mode = #tpu.pipeline_mode<synchronous>, transform_indices = @transform_4, window_bounds = array<i64: 16, 128>}]} {
    %c0_i32 = arith.constant 0 : i32
    %0 = arith.cmpi eq, %arg0, %c0_i32 : i32
    %1 = arith.extui %0 : i1 to i32
    %c0_i32_0 = arith.constant 0 : i32
    %2 = arith.cmpi ne, %1, %c0_i32_0 : i32
    scf.if %2 {
      %c0_15 = arith.constant 0 : index
      %c0_16 = arith.constant 0 : index
      %19 = vector.load %arg1[%c0_15, %c0_16] : memref<16x128xf32, #tpu.memory_space<vmem>>, vector<16x128xf32>
      %c0_17 = arith.constant 0 : index
      %c0_18 = arith.constant 0 : index
      %20 = vector.load %arg6[%c0_17, %c0_18] : memref<16x128xf32, #tpu.memory_space<vmem>>, vector<16x128xf32>
      tpu.vector_store %arg6[%c0_17, %c0_18], %19 {strides = array<i32>} : memref<16x128xf32, #tpu.memory_space<vmem>>, vector<16x128xf32>,
    } else {
    }
    %c0 = arith.constant 0 : index
    %c0_1 = arith.constant 0 : index
    %3 = vector.load %arg2[%c0, %c0_1] : memref<16x16xf32, #tpu.memory_space<vmem>>, vector<16x16xf32>
    %c0_2 = arith.constant 0 : index
    %c0_3 = arith.constant 0 : index
    %4 = vector.load %arg6[%c0_2, %c0_3] : memref<16x128xf32, #tpu.memory_space<vmem>>, vector<16x128xf32>
    %cst = arith.constant dense<0.000000e+00> : vector<16x128xf32>
    %5 = tpu.matmul %3, %4, %cst {dimension_numbers = #tpu.dot_dimension_numbers<[1], [0], [0], [1], [0, 0, 1, 1], [], []>} : vector<16x16xf32>, vector<16x128xf32>, vector<16x128xf32> -> vector<16x128xf32>
    %c0_4 = arith.constant 0 : index
    %c0_5 = arith.constant 0 : index
    %c0_6 = arith.constant 0 : index
    %6 = vector.load %arg3[%c0_4, %c0_5, %c0_6] : memref<1x128x128xf32, #tpu.memory_space<vmem>>, vector<1x128x128xf32>
    %7 = vector.shape_cast %6 : vector<1x128x128xf32> to vector<128x128xf32>
    %cst_7 = arith.constant dense<0.000000e+00> : vector<16x128xf32>
    %8 = tpu.matmul %5, %7, %cst_7 {dimension_numbers = #tpu.dot_dimension_numbers<[1], [0], [0], [1], [0, 0, 1, 1], [], []>} : vector<16x128xf32>, vector<128x128xf32>, vector<16x128xf32> -> vector<16x128xf32>
    %c0_8 = arith.constant 0 : index
    %c0_9 = arith.constant 0 : index
    %c0_10 = arith.constant 0 : index
    %9 = vector.load %arg4[%c0_8, %c0_9, %c0_10] : memref<1x1x128xf32, #tpu.memory_space<vmem>>, vector<1x1x128xf32>
    %10 = vector.shape_cast %9 : vector<1x1x128xf32> to vector<1x128xf32>
    %11 = vector.broadcast %10 : vector<1x128xf32> to vector<16x128xf32>
    %12 = arith.addf %8, %11 : vector<16x128xf32>
    %cst_11 = arith.constant 0.000000e+00 : f32
    %13 = vector.broadcast %cst_11 : f32 to vector<16x128xf32>
    %14 = arith.maximumf %12, %13 : vector<16x128xf32>
    %c0_12 = arith.constant 0 : index
    %c0_13 = arith.constant 0 : index
    %15 = vector.load %arg6[%c0_12, %c0_13] : memref<16x128xf32, #tpu.memory_space<vmem>>, vector<16x128xf32>
    tpu.vector_store %arg6[%c0_12, %c0_13], %14 {strides = array<i32>} : memref<16x128xf32, #tpu.memory_space<vmem>>, vector<16x128xf32>,
    %c2_i32 = arith.constant 2 : i32
    %16 = arith.cmpi eq, %arg0, %c2_i32 : i32
    %17 = arith.extui %16 : i1 to i32
    %c0_i32_14 = arith.constant 0 : i32
    %18 = arith.cmpi ne, %17, %c0_i32_14 : i32
    scf.if %18 {
      %c0_15 = arith.constant 0 : index
      %c0_16 = arith.constant 0 : index
      %19 = vector.load %arg6[%c0_15, %c0_16] : memref<16x128xf32, #tpu.memory_space<vmem>>, vector<16x128xf32>
      %c0_17 = arith.constant 0 : index
      %c0_18 = arith.constant 0 : index
      %20 = vector.load %arg5[%c0_17, %c0_18] : memref<16x128xf32, #tpu.memory_space<vmem>>, vector<16x128xf32>
      tpu.vector_store %arg5[%c0_17, %c0_18], %19 {strides = array<i32>} : memref<16x128xf32, #tpu.memory_space<vmem>>, vector<16x128xf32>,
    } else {
    }
    return
  }
  func.func @transform_0(%arg0: i32) -> (i32, i32) {
    %c0_i32 = arith.constant 0 : i32
    %c0_i32_0 = arith.constant 0 : i32
    %c0_i32_1 = arith.constant 0 : i32
    return %c0_i32, %c0_i32_0 : i32, i32
  }
  func.func @transform_1(%arg0: i32) -> (i32, i32) {
    %c0_i32 = arith.constant 0 : i32
    %c0_i32_0 = arith.constant 0 : i32
    %c0_i32_1 = arith.constant 0 : i32
    return %c0_i32, %c0_i32_0 : i32, i32
  }
  func.func @transform_2(%arg0: i32) -> (i32, i32, i32) {
    %c0_i32 = arith.constant 0 : i32
    %c0_i32_0 = arith.constant 0 : i32
    %c0_i32_1 = arith.constant 0 : i32
    return %arg0, %c0_i32, %c0_i32_0 : i32, i32, i32
  }
  func.func @transform_3(%arg0: i32) -> (i32, i32, i32) {
    %c0_i32 = arith.constant 0 : i32
    %c0_i32_0 = arith.constant 0 : i32
    %c0_i32_1 = arith.constant 0 : i32
    return %arg0, %c0_i32, %c0_i32_0 : i32, i32, i32
  }
  func.func @transform_4(%arg0: i32) -> (i32, i32) {
    %c0_i32 = arith.constant 0 : i32
    %c0_i32_0 = arith.constant 0 : i32
    %c0_i32_1 = arith.constant 0 : i32
    return %c0_i32, %c0_i32_0 : i32, i32
  }
}

</mosaic_0001>

<llo_original>
// kernel: tpu_custom_call.1
$region0: #{tpu_custom_call.1}
  #allocation0 [shape = 'u32[]', space=smem, size = 0x4, offset = 0x4, fixed_abs, tag = 'smem constant byte address 0x4 - core index']
  #allocation1 [shape = 'u32[144,128]{1,0:T(1,128)}', space=vmem, size = 0x12000, scoped, tag = 'internal scratch']
  #allocation2 [shape = 'f32[16,128]{1,0:T(8,128)}', space=vmem, size = 0x2000, scoped, tag = 'scratch operand']
  %s0 = inlined_call_operand.hbm [shape: f32[16,128], index: 0, kind: input, shape index: {}]
  %s1 = inlined_call_operand.hbm [shape: f32[16,16], index: 1, kind: input, shape index: {}]
  %s2 = inlined_call_operand.hbm [shape: f32[3,128,128], index: 2, kind: input, shape index: {}]
  %s3 = inlined_call_operand.vmem [shape: f32[3,1,128], index: 3, kind: input, shape index: {}]
  %s4 = inlined_call_operand.hbm [shape: f32[16,128], index: 4, kind: output, shape index: {}]
  %s5 = sld [smem:[#allocation0]]
  $region69: #{tpu_custom_call.1} parent=0
    _
  %s7 = ssub.s32 1, %s5
  %s8 = scalar_select 0, %s7, %s5
  $region1: #{tpu_custom_call.1} parent=0
    #allocation3 [shape = 'u8[8192]{0}', space=vmem, size = 0x2000, scoped, tag = 'input window, operand 0, single buffered']
    #allocation4 [shape = 's32[2]{0}', space=sflag, size = 0x8, scoped, tag = 'scoped memory for tpu_custom_call.1']
    #allocation5 [shape = 's32[2]{0}', space=sflag, size = 0x8, scoped, tag = 'scoped memory for tpu_custom_call.1']
    #allocation6 [shape = 'u8[8192]{0}', space=vmem, size = 0x2000, scoped, tag = 'input window, operand 1, single buffered']
    #allocation7 [shape = 's32[1]{0}', space=sflag, size = 0x4, scoped, tag = 'scoped memory for tpu_custom_call.1']
    #allocation8 [shape = 'u8[131072]{0}', space=vmem, size = 0x20000, scoped, tag = 'input window, operand 2']
    #allocation9 [shape = 'u8[8192]{0}', space=vmem, size = 0x2000, scoped, tag = 'output window, operand 0, single buffered']
    %9 = vsyncpa [#allocation4], 0
    %10 = vsyncpa [#allocation7], 0
    %11 = vsyncpa [#allocation5], 0
    loop: start=0, step=1, limit=5
    $region2: #{tpu_custom_call.1} parent=1 // loop_pre_header
      _
    $region3: #{tpu_custom_call.1} parent=1 // loop_header
      %s13 = sphi 0, %s17
      %p14 = scmp.ge.s32.totalorder %s13, 5
      %s21 = sphi 0, %s21
      %s23 = sphi 0, %s21
      %s24 = sphi 0, %s23
      %s38 = sphi 0, %s24
      %s42 = sphi 0, %s42
      %s44 = sphi 0, %s42
      %s45 = sphi 0, %s44
      %s59 = sphi 0, %s45
      %s65 = sphi 0, %s67
      %s68 = sphi 0, %s65
      %s69 = sphi 0, %s68
      %s85 = sphi 0, %s69
      %s91 = sphi 0, %s93
      %s94 = sphi 0, %s91
      %s95 = sphi 0, %s94
      %s111 = sphi 0, %s95
      %s115 = sphi 0, %s115
      %s117 = sphi 0, %s115
      %s118 = sphi 0, %s117
      %s132 = sphi 0, %s118
    $region4: #{tpu_custom_call.1} parent=1 // loop_header_branch
      %16 = sbr.rel (%p14) target = $region8
    $region5: #{tpu_custom_call.1} parent=1 // loop_body
      %s18 = ssub.s32 %s13, 1
      %s19 = ssub.s32 %s13, 2
      %s20 = sadd.s32 %s13, 1
      %s22 = sadd.s32 %s21, 1
      %p25 = scmp.eq.s32.totalorder %s13, 2
      %p26 = scmp.ne.s32.totalorder %s21, %s23
      %p27 = scmp.eq.s32.totalorder %s13, 0
      %p28 = por %p26, %p27
      %p29 = scmp.ne.s32.totalorder %s21, %s23
      %p30 = scmp.eq.s32.totalorder %s18, 2
      %p31 = por %p29, %p30
      %p32 = scmp.ne.s32.totalorder %s23, %s24
      %p33 = scmp.eq.s32.totalorder %s18, 0
      %p34 = por %p32, %p33
      %p35 = scmp.ne.s32.totalorder %s23, %s24
      %p36 = scmp.eq.s32.totalorder %s19, 2
      %p37 = por %p35, %p36
      %p39 = scmp.ne.s32.totalorder %s24, %s38
      %p40 = scmp.eq.s32.totalorder %s19, 0
      %p41 = por %p39, %p40
      %s43 = sadd.s32 %s42, 1
      %p46 = scmp.eq.s32.totalorder %s13, 2
      %p47 = scmp.ne.s32.totalorder %s42, %s44
      %p48 = scmp.eq.s32.totalorder %s13, 0
      %p49 = por %p47, %p48
      %p50 = scmp.ne.s32.totalorder %s42, %s44
      %p51 = scmp.eq.s32.totalorder %s18, 2
      %p52 = por %p50, %p51
      %p53 = scmp.ne.s32.totalorder %s44, %s45
      %p54 = scmp.eq.s32.totalorder %s18, 0
      %p55 = por %p53, %p54
      %p56 = scmp.ne.s32.totalorder %s44, %s45
      %p57 = scmp.eq.s32.totalorder %s19, 2
      %p58 = por %p56, %p57
      %p60 = scmp.ne.s32.totalorder %s45, %s59
      %p61 = scmp.eq.s32.totalorder %s19, 0
      %p62 = por %p60, %p61
      %s63 = ssub.s32 %s13, %s20
      %p64 = scmp.eq.s32.totalorder %s63, 0
      %s66 = sadd.s32 %s65, 1
      %s67 = scalar_select %p64, %s65, %s66
      %p70 = pneg %p64
      %p71 = scmp.eq.s32.totalorder %s13, 2
      %p72 = por %p70, %p71
      %p73 = scmp.ne.s32.totalorder %s65, %s68
      %p74 = scmp.eq.s32.totalorder %s13, 0
      %p75 = por %p73, %p74
      %p76 = scmp.ne.s32.totalorder %s65, %s68
      %p77 = scmp.eq.s32.totalorder %s18, 2
      %p78 = por %p76, %p77
      %p79 = scmp.ne.s32.totalorder %s68, %s69
      %p80 = scmp.eq.s32.totalorder %s18, 0
      %p81 = por %p79, %p80
      %p82 = scmp.ne.s32.totalorder %s68, %s69
      %p83 = scmp.eq.s32.totalorder %s19, 2
      %p84 = por %p82, %p83
      %p86 = scmp.ne.s32.totalorder %s69, %s85
      %p87 = scmp.eq.s32.totalorder %s19, 0
      %p88 = por %p86, %p87
      %s89 = ssub.s32 %s13, %s20
      %p90 = scmp.eq.s32.totalorder %s89, 0
      %s92 = sadd.s32 %s91, 1
      %s93 = scalar_select %p90, %s91, %s92
      %p96 = pneg %p90
      %p97 = scmp.eq.s32.totalorder %s13, 2
      %p98 = por %p96, %p97
      %p99 = scmp.ne.s32.totalorder %s91, %s94
      %p100 = scmp.eq.s32.totalorder %s13, 0
      %p101 = por %p99, %p100
      %p102 = scmp.ne.s32.totalorder %s91, %s94
      %p103 = scmp.eq.s32.totalorder %s18, 2
      %p104 = por %p102, %p103
      %p105 = scmp.ne.s32.totalorder %s94, %s95
      %p106 = scmp.eq.s32.totalorder %s18, 0
      %p107 = por %p105, %p106
      %p108 = scmp.ne.s32.totalorder %s94, %s95
      %p109 = scmp.eq.s32.totalorder %s19, 2
      %p110 = por %p108, %p109
      %p112 = scmp.ne.s32.totalorder %s95, %s111
      %p113 = scmp.eq.s32.totalorder %s19, 0
      %p114 = por %p112, %p113
      %s116 = sadd.s32 %s115, 1
      %p119 = scmp.eq.s32.totalorder %s13, 2
      %p120 = scmp.ne.s32.totalorder %s115, %s117
      %p121 = scmp.eq.s32.totalorder %s13, 0
      %p122 = por %p120, %p121
      %p123 = scmp.ne.s32.totalorder %s115, %s117
      %p124 = scmp.eq.s32.totalorder %s18, 2
      %p125 = por %p123, %p124
      %p126 = scmp.ne.s32.totalorder %s117, %s118
      %p127 = scmp.eq.s32.totalorder %s18, 0
      %p128 = por %p126, %p127
      %p129 = scmp.ne.s32.totalorder %s117, %s118
      %p130 = scmp.eq.s32.totalorder %s19, 2
      %p131 = por %p129, %p130
      %p133 = scmp.ne.s32.totalorder %s118, %s132
      %p134 = scmp.eq.s32.totalorder %s19, 0
      %p135 = por %p133, %p134
      %p136 = scmp.le.s32.totalorder 1, %s13
      %p137 = scmp.lt.s32.totalorder %s13, 4
      %p138 = pnand %p136, %p137
      %p139 = pneg %p138
      // Predicated region
      $region9: #{tpu_custom_call.1} parent=5 // pred_check
        _
      $region10: #{tpu_custom_call.1} parent=5 // pred_check_branch
        %141 = sbr.rel (%p138) target = $region12
      $region11: #{tpu_custom_call.1} parent=5 // pred_region
        %s142 = ssub.s32 %s13, 1
        // Predicated region
        $region13: #{tpu_custom_call.1} parent=11 // pred_check
          %p143 = pneg %p34
        $region14: #{tpu_custom_call.1} parent=11 // pred_check_branch
          %145 = sbr.rel (%p143) target = $region16
        $region15: #{tpu_custom_call.1} parent=11 // pred_region
          %s147 = ssub.s32 256, 256
          %148 = vsyncadd [#allocation4], %s147
          %s149 = sshll.u32 [#allocation3], 4
          %s150 = int_to_ptr.vmem [resolvable:$true] %s149
          %155 = dma.hbm_to_vmem [thread:$0]  %s0, 256, %s150, [#allocation4], 128, 128, 8
        $region16: #{tpu_custom_call.1} parent=11 // pred_fallthru
          _
        // Predicated region
        $region17: #{tpu_custom_call.1} parent=11 // pred_check
          %p156 = pneg %p55
        $region18: #{tpu_custom_call.1} parent=11 // pred_check_branch
          %158 = sbr.rel (%p156) target = $region20
        $region19: #{tpu_custom_call.1} parent=11 // pred_region
          %s160 = ssub.s32 256, 256
          %161 = vsyncadd [#allocation7], %s160
          %s162 = sshll.u32 [#allocation6], 4
          %s163 = int_to_ptr.vmem [resolvable:$true] %s162
          %168 = dma.hbm_to_vmem [thread:$0]  %s1, 256, %s163, [#allocation7], 128, 128, 8
        $region20: #{tpu_custom_call.1} parent=11 // pred_fallthru
          _
      $region12: #{tpu_custom_call.1} parent=5 // pred_fallthru
        _
      %p169 = scmp.lt.s32.totalorder %s13, 3
      // Predicated region
      $region21: #{tpu_custom_call.1} parent=5 // pred_check
        %p170 = pneg %p169
      $region22: #{tpu_custom_call.1} parent=5 // pred_check_branch
        %172 = sbr.rel (%p170) target = $region24
      $region23: #{tpu_custom_call.1} parent=5 // pred_region
        // Predicated region
        $region25: #{tpu_custom_call.1} parent=23 // pred_check
          %p173 = pneg %p75
        $region26: #{tpu_custom_call.1} parent=23 // pred_check_branch
          %175 = sbr.rel (%p173) target = $region28
        $region27: #{tpu_custom_call.1} parent=23 // pred_region
          %s176 = sand.u32 %s13, 1
          %s177 = scalar_lea.sflag [#allocation4], %s176
          %s178 = sand.u32 %s65, 1
          %s179 = smul.addr %s178, 128
          %s180 = scalar_lea.vmem [#allocation8], %s179
          %s182 = ssub.s32 2048, 2048
          %183 = vsyncadd %s177, %s182
          %s184 = smul.addr %s13, 16
          %s185 = smul.addr %s184, 128
          %s186 = scalar_lea.hbm %s2, %s185
          %s187 = sshll.u32 %s180, 4
          %s188 = int_to_ptr.vmem [resolvable:$true] %s187
          %193 = dma.hbm_to_vmem [thread:$0]  %s186, 2048, %s188, %s177, 128, 128, 8
        $region28: #{tpu_custom_call.1} parent=23 // pred_fallthru
          _
        // Predicated region
        $region29: #{tpu_custom_call.1} parent=23 // pred_check
          %p194 = pneg %p101
        $region30: #{tpu_custom_call.1} parent=23 // pred_check_branch
          %196 = sbr.rel (%p194) target = $region32
        $region31: #{tpu_custom_call.1} parent=23 // pred_region
          %p197 = scmp.lt.s32.totalorder %s13, 2
          %s198 = scalar_select %p197, %s13, 2
          %s199 = scalar_lea.vmem %s3, %s198
        $region32: #{tpu_custom_call.1} parent=23 // pred_fallthru
          _
      $region24: #{tpu_custom_call.1} parent=5 // pred_fallthru
        _
      %p200 = scmp.le.s32.totalorder 1, %s13
      %p201 = scmp.lt.s32.totalorder %s13, 4
      %p202 = pnand %p200, %p201
      %p203 = pneg %p202
      // Predicated region
      $region33: #{tpu_custom_call.1} parent=5 // pred_check
        _
      $region34: #{tpu_custom_call.1} parent=5 // pred_check_branch
        %205 = sbr.rel (%p202) target = $region36
      $region35: #{tpu_custom_call.1} parent=5 // pred_region
        %s206 = ssub.s32 %s13, 1
        // Predicated region
        $region37: #{tpu_custom_call.1} parent=35 // pred_check
          %p207 = pneg %p34
        $region38: #{tpu_custom_call.1} parent=35 // pred_check_branch
          %209 = sbr.rel (%p207) target = $region40
        $region39: #{tpu_custom_call.1} parent=35 // pred_region
          %210 = dma.done [#allocation4], 256
        $region40: #{tpu_custom_call.1} parent=35 // pred_fallthru
          _
        // Predicated region
        $region41: #{tpu_custom_call.1} parent=35 // pred_check
          %p211 = pneg %p55
        $region42: #{tpu_custom_call.1} parent=35 // pred_check_branch
          %213 = sbr.rel (%p211) target = $region44
        $region43: #{tpu_custom_call.1} parent=35 // pred_region
          %214 = dma.done [#allocation7], 256
        $region44: #{tpu_custom_call.1} parent=35 // pred_fallthru
          _
        %s215 = sand.u32 %s18, 1
        %s216 = scalar_lea.sflag [#allocation4], %s215
        %s217 = sand.u32 %s68, 1
        %s218 = smul.addr %s217, 128
        %s219 = scalar_lea.vmem [#allocation8], %s218
        // Predicated region
        $region45: #{tpu_custom_call.1} parent=35 // pred_check
          %p220 = pneg %p81
        $region46: #{tpu_custom_call.1} parent=35 // pred_check_branch
          %222 = sbr.rel (%p220) target = $region48
        $region47: #{tpu_custom_call.1} parent=35 // pred_region
          %223 = dma.done %s216, 2048
        $region48: #{tpu_custom_call.1} parent=35 // pred_fallthru
          _
        %p224 = pneg %p34
        %p225 = pneg %p31
        %p226 = pneg %p55
        %p227 = pneg %p52
        %s228 = sand.u32 %s18, 1
        %s229 = scalar_lea.sflag [#allocation4], %s228
        %s230 = sand.u32 %s68, 1
        %s231 = smul.addr %s230, 128
        %s232 = scalar_lea.vmem [#allocation8], %s231
        %p233 = pneg %p81
        %p234 = pneg %p78
        %p235 = scmp.lt.s32.totalorder %s18, 2
        %s236 = scalar_select %p235, %s18, 2
        %s237 = scalar_lea.vmem %s3, %s236
        %p238 = pneg %p107
        %p239 = pneg %p104
        %p240 = pneg %p128
        %p241 = pneg %p125
        %p242 = scmp.lt.s32.totalorder %s18, 2
        %s243 = scalar_select %p242, %s18, 2
        %s244 = scalar_lea.vmem %s3, %s243
        %p245 = scmp.eq.s32.totalorder %s18, 0
        // Predicated region
        $region49: #{tpu_custom_call.1} parent=35 // pred_check
          %p246 = pneg %p245
        $region50: #{tpu_custom_call.1} parent=35 // pred_check_branch
          %248 = sbr.rel (%p246) target = $region52
        $region51: #{tpu_custom_call.1} parent=35 // pred_region
          %v249 = vld [vmem:[#allocation3] sm:$0xff]
          %v250 = vld [vmem:[#allocation3 + $0x8] sm:$0xff]
          %251 = vst [vmem:[#allocation2] sm:$0xff] %v249
          %252 = vst [vmem:[#allocation2 + $0x8] sm:$0xff] %v250
        $region52: #{tpu_custom_call.1} parent=35 // pred_fallthru
          _
        %v253 = vld [vmem:[#allocation6] sm:$0xff]
        %v254 = vld [vmem:[#allocation6 + $0x8] sm:$0xff]
        %v255 = vld [vmem:[#allocation2] sm:$0xff]
        %v256 = vld [vmem:[#allocation2 + $0x8] sm:$0xff]
        %vm257 = vcmask 130048
        %v259 = vsel %vm257, %v253, 0
        %v262 = vsel %vm257, %v254, 0
        %264 = vmatprep.subr.mxu0 0.0
        %265 = vmatpush1.msra.mxu0 %v255
        %266 = vmatprep.subr.mxu0 0.0
        %267 = vmatpush1.msra.mxu0 %v256
        %268 = vmatprep.subr.mxu0 0.0
        %269 = vmatpush1.msra.mxu0 0.0
        %270 = vmatprep.subr.mxu0 0.0
        %271 = vmatpush1.msra.mxu0 0.0
        %272 = vmatprep.subr.mxu0 0.0
        %273 = vmatpush1.msra.mxu0 0.0
        %274 = vmatprep.subr.mxu0 0.0
        %275 = vmatpush1.msra.mxu0 0.0
        %276 = vmatprep.subr.mxu0 0.0
        %277 = vmatpush1.msra.mxu0 0.0
        %278 = vmatprep.subr.mxu0 0.0
        %279 = vmatpush1.msra.mxu0 0.0
        %280 = vmatprep.subr.mxu0 0.0
        %281 = vmatpush1.msra.mxu0 0.0
        %282 = vmatprep.subr.mxu0 0.0
        %283 = vmatpush1.msra.mxu0 0.0
        %284 = vmatprep.subr.mxu0 0.0
        %285 = vmatpush1.msra.mxu0 0.0
        %286 = vmatprep.subr.mxu0 0.0
        %287 = vmatpush1.msra.mxu0 0.0
        %288 = vmatprep.subr.mxu0 0.0
        %289 = vmatpush1.msra.mxu0 0.0
        %290 = vmatprep.subr.mxu0 0.0
        %291 = vmatpush1.msra.mxu0 0.0
        %292 = vmatprep.subr.mxu0 0.0
        %293 = vmatpush1.msra.mxu0 0.0
        %294 = vmatprep.subr.mxu0 0.0
        %295 = vmatpush1.msra.mxu0 0.0
        %296 = vmatprep.subr.mxu0 0.0
        %297 = vmatpush1.msra.mxu0 0.0
        %298 = vmatprep.subr.mxu0 0.0
        %299 = vmatpush1.msra.mxu0 0.0
        %300 = vmatprep.subr.mxu0 0.0
        %301 = vmatpush1.msra.mxu0 0.0
        %302 = vmatprep.subr.mxu0 0.0
        %303 = vmatpush1.msra.mxu0 0.0
        %304 = vmatprep.subr.mxu0 0.0
        %305 = vmatpush1.msra.mxu0 0.0
        %306 = vmatprep.subr.mxu0 0.0
        %307 = vmatpush1.msra.mxu0 0.0
        %308 = vmatprep.subr.mxu0 0.0
        %309 = vmatpush1.msra.mxu0 0.0
        %310 = vmatprep.subr.mxu0 0.0
        %311 = vmatpush1.msra.mxu0 0.0
        %312 = vmatprep.subr.mxu0 0.0
        %313 = vmatpush1.msra.mxu0 0.0
        %314 = vmatprep.subr.mxu0 0.0
        %315 = vmatpush1.msra.mxu0 0.0
        %316 = vmatprep.subr.mxu0 0.0
        %317 = vmatpush1.msra.mxu0 0.0
        %318 = vmatprep.subr.mxu0 0.0
        %319 = vmatpush1.msra.mxu0 0.0
        %320 = vmatprep.subr.mxu0 0.0
        %321 = vmatpush1.msra.mxu0 0.0
        %322 = vmatprep.subr.mxu0 0.0
        %323 = vmatpush1.msra.mxu0 0.0
        %324 = vmatprep.subr.mxu0 0.0
        %325 = vmatpush1.msra.mxu0 0.0
        %326 = vmatprep.subr.mxu0 0.0
        %327 = vmatpush1.msra.mxu0 0.0
        %328 = vmatprep.mubr.f32.mxu0 0.0
        %329 = vmatmul.mubr.f32.gmra.mrb[0].mxu0 %v259
        %v330 = vpop.f32.mrb[0].mxu0
        %v331 = vadd.f32 0.0, %v330
        %v332 = vpop.f32.mrb[0].mxu0
        %333 = vmatprep.mubr.f32.mxu0 0.0
        %334 = vmatmul.mubr.f32.gmra.mrb[0].mxu0 %v262
        %v335 = vpop.f32.mrb[0].mxu0
        %v336 = vadd.f32 0.0, %v335
        %v337 = vpop.f32.mrb[0].mxu0
        %338 = vdwg.mxu0
        %v339 = vld [vmem:[%s219] sm:$0xff]
        %v340 = vld [vmem:[%s219 + $0x8] sm:$0xff]
        %v341 = vld [vmem:[%s219 + $0x10] sm:$0xff]
        %v342 = vld [vmem:[%s219 + $0x18] sm:$0xff]
        %v343 = vld [vmem:[%s219 + $0x20] sm:$0xff]
        %v344 = vld [vmem:[%s219 + $0x28] sm:$0xff]
        %v345 = vld [vmem:[%s219 + $0x30] sm:$0xff]
        %v346 = vld [vmem:[%s219 + $0x38] sm:$0xff]
        %v347 = vld [vmem:[%s219 + $0x40] sm:$0xff]
        %v348 = vld [vmem:[%s219 + $0x48] sm:$0xff]
        %v349 = vld [vmem:[%s219 + $0x50] sm:$0xff]
        %v350 = vld [vmem:[%s219 + $0x58] sm:$0xff]
        %v351 = vld [vmem:[%s219 + $0x60] sm:$0xff]
        %v352 = vld [vmem:[%s219 + $0x68] sm:$0xff]
        %v353 = vld [vmem:[%s219 + $0x70] sm:$0xff]
        %v354 = vld [vmem:[%s219 + $0x78] sm:$0xff]
        %v355 = vld [vmem:[%s244] sm:$0x1]
        %v357 = vlaneseq
        %v358 = vshrl.u32 %v357, 7
        %v359 = vsub.s32 0, %v358
        %v360 = vrot.slane %v355, %v359
        %362 = vmatprep.subr.mxu0 0.0
        %363 = vmatpush1.msra.mxu0 %v339
        %364 = vmatprep.subr.mxu0 0.0
        %365 = vmatpush1.msra.mxu0 %v340
        %366 = vmatprep.subr.mxu0 0.0
        %367 = vmatpush1.msra.mxu0 %v341
        %368 = vmatprep.subr.mxu0 0.0
        %369 = vmatpush1.msra.mxu0 %v342
        %370 = vmatprep.subr.mxu0 0.0
        %371 = vmatpush1.msra.mxu0 %v343
        %372 = vmatprep.subr.mxu0 0.0
        %373 = vmatpush1.msra.mxu0 %v344
        %374 = vmatprep.subr.mxu0 0.0
        %375 = vmatpush1.msra.mxu0 %v345
        %376 = vmatprep.subr.mxu0 0.0
        %377 = vmatpush1.msra.mxu0 %v346
        %378 = vmatprep.subr.mxu0 0.0
        %379 = vmatpush1.msra.mxu0 %v347
        %380 = vmatprep.subr.mxu0 0.0
        %381 = vmatpush1.msra.mxu0 %v348
        %382 = vmatprep.subr.mxu0 0.0
        %383 = vmatpush1.msra.mxu0 %v349
        %384 = vmatprep.subr.mxu0 0.0
        %385 = vmatpush1.msra.mxu0 %v350
        %386 = vmatprep.subr.mxu0 0.0
        %387 = vmatpush1.msra.mxu0 %v351
        %388 = vmatprep.subr.mxu0 0.0
        %389 = vmatpush1.msra.mxu0 %v352
        %390 = vmatprep.subr.mxu0 0.0
        %391 = vmatpush1.msra.mxu0 %v353
        %392 = vmatprep.subr.mxu0 0.0
        %393 = vmatpush1.msra.mxu0 %v354
        %394 = vmatprep.subr.mxu0 0.0
        %395 = vmatpush1.msra.mxu0 0.0
        %396 = vmatprep.subr.mxu0 0.0
        %397 = vmatpush1.msra.mxu0 0.0
        %398 = vmatprep.subr.mxu0 0.0
        %399 = vmatpush1.msra.mxu0 0.0
        %400 = vmatprep.subr.mxu0 0.0
        %401 = vmatpush1.msra.mxu0 0.0
        %402 = vmatprep.subr.mxu0 0.0
        %403 = vmatpush1.msra.mxu0 0.0
        %404 = vmatprep.subr.mxu0 0.0
        %405 = vmatpush1.msra.mxu0 0.0
        %406 = vmatprep.subr.mxu0 0.0
        %407 = vmatpush1.msra.mxu0 0.0
        %408 = vmatprep.subr.mxu0 0.0
        %409 = vmatpush1.msra.mxu0 0.0
        %410 = vmatprep.subr.mxu0 0.0
        %411 = vmatpush1.msra.mxu0 0.0
        %412 = vmatprep.subr.mxu0 0.0
        %413 = vmatpush1.msra.mxu0 0.0
        %414 = vmatprep.subr.mxu0 0.0
        %415 = vmatpush1.msra.mxu0 0.0
        %416 = vmatprep.subr.mxu0 0.0
        %417 = vmatpush1.msra.mxu0 0.0
        %418 = vmatprep.subr.mxu0 0.0
        %419 = vmatpush1.msra.mxu0 0.0
        %420 = vmatprep.subr.mxu0 0.0
        %421 = vmatpush1.msra.mxu0 0.0
        %422 = vmatprep.subr.mxu0 0.0
        %423 = vmatpush1.msra.mxu0 0.0
        %424 = vmatprep.subr.mxu0 0.0
        %425 = vmatpush1.msra.mxu0 0.0
        %426 = vmatprep.mubr.f32.mxu0 0.0
        %427 = vmatmul.mubr.f32.gmra.mrb[0].mxu0 %v331
        %v428 = vpop.f32.mrb[0].mxu0
        %v429 = vadd.f32 %v360, %v428
        %v430 = vpop.f32.mrb[0].mxu0
        %431 = vmatprep.mubr.f32.mxu0 0.0
        %432 = vmatmul.mubr.f32.gmra.mrb[0].mxu0 %v336
        %v433 = vpop.f32.mrb[0].mxu0
        %v434 = vadd.f32 %v360, %v433
        %v435 = vpop.f32.mrb[0].mxu0
        %436 = vdwg.mxu0
        %v437 = vmax.f32 %v429, 0.0
        %v438 = vmax.f32 %v434, 0.0
        %439 = vst [vmem:[#allocation2] sm:$0xff] %v437
        %440 = vst [vmem:[#allocation2 + $0x8] sm:$0xff] %v438
        %p441 = scmp.eq.s32.totalorder %s18, 2
        // Predicated region
        $region53: #{tpu_custom_call.1} parent=35 // pred_check
          %p442 = pneg %p441
        $region54: #{tpu_custom_call.1} parent=35 // pred_check_branch
          %444 = sbr.rel (%p442) target = $region56
        $region55: #{tpu_custom_call.1} parent=35 // pred_region
          %v445 = vld [vmem:[#allocation2] sm:$0xff]
          %v446 = vld [vmem:[#allocation2 + $0x8] sm:$0xff]
          %447 = vst [vmem:[#allocation9] sm:$0xff] %v445
          %448 = vst [vmem:[#allocation9 + $0x8] sm:$0xff] %v446
        $region56: #{tpu_custom_call.1} parent=35 // pred_fallthru
          _
        // Predicated region
        $region57: #{tpu_custom_call.1} parent=35 // pred_check
          %p449 = pneg %p125
        $region58: #{tpu_custom_call.1} parent=35 // pred_check_branch
          %451 = sbr.rel (%p449) target = $region60
        $region59: #{tpu_custom_call.1} parent=35 // pred_region
          %s453 = ssub.s32 256, 256
          %454 = vsyncadd [#allocation5], %s453
          %s455 = sshll.u32 [#allocation9], 4
          %s456 = int_to_ptr.vmem [resolvable:$true] %s455
          %461 = dma.vmem_to_hbm [thread:$0]  %s456, 256, %s4, [#allocation5], 128, 128, 8
        $region60: #{tpu_custom_call.1} parent=35 // pred_fallthru
          _
        // Predicated region
        $region61: #{tpu_custom_call.1} parent=35 // pred_check
          %p462 = pneg %p125
        $region62: #{tpu_custom_call.1} parent=35 // pred_check_branch
          %464 = sbr.rel (%p462) target = $region64
        $region63: #{tpu_custom_call.1} parent=35 // pred_region
          %465 = dma.done [#allocation5], 256
        $region64: #{tpu_custom_call.1} parent=35 // pred_fallthru
          _
      $region36: #{tpu_custom_call.1} parent=5 // pred_fallthru
        _
      %p466 = scmp.le.s32.totalorder 2, %s13
      // Predicated region
      $region65: #{tpu_custom_call.1} parent=5 // pred_check
        %p467 = pneg %p466
      $region66: #{tpu_custom_call.1} parent=5 // pred_check_branch
        %469 = sbr.rel (%p467) target = $region68
      $region67: #{tpu_custom_call.1} parent=5 // pred_region
        %s470 = ssub.s32 %s13, 2
      $region68: #{tpu_custom_call.1} parent=5 // pred_fallthru
        _
    $region6: #{tpu_custom_call.1} parent=1 // loop_footer
      %s17 = sadd.s32 1, %s13
    $region7: #{tpu_custom_call.1} parent=1 // loop_footer_branch
      %12 = sbr.rel target = $region3
    $region8: #{tpu_custom_call.1} parent=1 // loop_exit
      _
    %471 = vsyncpa [#allocation4], 1
    %s472 = scalar_lea.sflag [#allocation4], 1
    %473 = vsyncpa %s472, 1
    %474 = vsyncpa [#allocation7], 1
    %475 = vsyncpa [#allocation5], 1
    %s476 = scalar_lea.sflag [#allocation5], 1
    %477 = vsyncpa %s476, 1

</llo_original>
